<compile_context>
chip_gen: v6e
topology: v6e:2x2x1
jax: 0.10.0
libtpu: 0.0.40
codegen_flags: <defaults>
</compile_context>

<pallas_src>
import functools

import jax
import jax.numpy as jnp
from jax.experimental import pallas as pl
from jax.experimental.pallas import tpu as pltpu


# ---------------------------------------------------------------------------
# Pass 1: conv-as-GEMM + per-block partial channel statistics.
# ---------------------------------------------------------------------------
def _emit_partial_stats(y, sum_ref, sq_ref):
    tm, ocp = y.shape
    y3 = y.reshape(tm // 8, 8, ocp)
    # Partial reductions: collapsing only the leading axis leaves an (8, OCp)
    # slab (pure sublane-aligned VPU adds, no cross-lane XLU work); the tiny
    # final reduce happens in XLA.
    sum_ref[...] = jnp.sum(y3, axis=0)
    sq_ref[...] = jnp.sum(y3 * y3, axis=0)


def conv_stats_kernel(p_ref, w_ref, y_ref, sum_ref, sq_ref):
    """Single K-tile: direct GEMM + partial stats."""
    y = jnp.dot(p_ref[...], w_ref[...], preferred_element_type=jnp.float32)
    y_ref[...] = y
    _emit_partial_stats(y, sum_ref, sq_ref)


def conv_stats_kernel_ktiled(p_ref, w_ref, y_ref, sum_ref, sq_ref):
    """K-tiled: accumulate into the resident output block; stats at last k."""
    k = pl.program_id(1)

    @pl.when(k == 0)
    def _():
        y_ref[...] = jnp.zeros_like(y_ref)

    y_ref[...] += jnp.dot(p_ref[...], w_ref[...],
                          preferred_element_type=jnp.float32)

    @pl.when(k == pl.num_programs(1) - 1)
    def _():
        _emit_partial_stats(y_ref[...], sum_ref, sq_ref)


# ---------------------------------------------------------------------------
# Pass 2: fused BatchNorm affine (precomputed scale/shift) + LeakyReLU(0.1),
# in place over the conv output.
# ---------------------------------------------------------------------------
def bn_act_kernel(y_ref, scale_ref, shift_ref, o_ref, *, neg_slope):
    z = y_ref[...] * scale_ref[...] + shift_ref[...]
    o_ref[...] = jnp.where(z > 0, z, neg_slope * z)


# ---------------------------------------------------------------------------
# Host-side helpers.
# ---------------------------------------------------------------------------
def _round_up(x, mult):
    return ((x + mult - 1) // mult) * mult


def _im2col(x, kh, kw, stride, padding):
    """x: (N, C, H, W) -> patches (N*OH*OW, C*KH*KW), plus (OH, OW)."""
    n, c, h, w = x.shape
    xp = jnp.pad(x, ((0, 0), (0, 0), (padding, padding), (padding, padding)))
    oh = (h + 2 * padding - kh) // stride + 1
    ow = (w + 2 * padding - kw) // stride + 1
    taps = []
    for i in range(kh):
        for j in range(kw):
            taps.append(xp[:, :, i:i + stride * oh:stride,
                           j:j + stride * ow:stride])
    # (N, C, OH, OW, KH*KW) -> (N, OH, OW, C, KH*KW) -> (M, C*KH*KW)
    patches = jnp.stack(taps, axis=-1)
    patches = patches.transpose(0, 2, 3, 1, 4).reshape(n * oh * ow, c * kh * kw)
    return patches, oh, ow


def conv_bn_leakyrelu(x, weight, gamma, beta, *, stride, padding,
                      eps=1e-5, neg_slope=0.1, tm_max=1024, tk_max=1024):
    """Forward pass of ConvolutionalLayer. x: (N, C, H, W) -> (N, OC, OH, OW)."""
    n, c, h, w = x.shape
    oc, _, kh, kw = weight.shape

    patches, oh, ow = _im2col(x, kh, kw, stride, padding)      # (M, K) f32
    m, kdim = patches.shape

    # Lane-dense padding: K and OC up to multiples of 128.
    kp = _round_up(kdim, 128)
    ocp = _round_up(oc, 128)

    # Tile sizes: largest M tile fitting a modest double-buffered VMEM budget;
    # K is tiled only when C*KH*KW is genuinely large.
    tk = min(tk_max, kp)
    tm = min(tm_max, _round_up(m, 128))
    budget = 12 << 20          # bytes for double-buffered pass-1 blocks
    while tm > 128 and 8 * (tm * tk + tk * ocp + tm * ocp + 16 * ocp) > budget:
        tm -= 128
    mp = _round_up(m, tm)
    nblk = mp // tm
    nk = kp // tk

    patches_p = jnp.pad(patches, ((0, mp - m), (0, kp - kdim)))      # zeros
    wmat = jnp.pad(weight.reshape(oc, kdim).T,
                   ((0, kp - kdim), (0, ocp - oc)))                  # (Kp, OCp)

    vmem_limit = 32 * 1024 * 1024
    out_shapes = (jax.ShapeDtypeStruct((mp, ocp), jnp.float32),
                  jax.ShapeDtypeStruct((nblk * 8, ocp), jnp.float32),
                  jax.ShapeDtypeStruct((nblk * 8, ocp), jnp.float32))

    if nk == 1:
        kernel = conv_stats_kernel
        dims = ("parallel",)
        grid_spec = pltpu.PrefetchScalarGridSpec(
            num_scalar_prefetch=0,
            grid=(nblk,),
            in_specs=[pl.BlockSpec((tm, kp), lambda i: (i, 0)),
                      pl.BlockSpec((kp, ocp), lambda i: (0, 0))],
            out_specs=(pl.BlockSpec((tm, ocp), lambda i: (i, 0)),
                       pl.BlockSpec((8, ocp), lambda i: (i, 0)),
                       pl.BlockSpec((8, ocp), lambda i: (i, 0))))
    else:
        kernel = conv_stats_kernel_ktiled
        dims = ("parallel", "arbitrary")
        grid_spec = pltpu.PrefetchScalarGridSpec(
            num_scalar_prefetch=0,
            grid=(nblk, nk),
            in_specs=[pl.BlockSpec((tm, tk), lambda i, k: (i, k)),
                      pl.BlockSpec((tk, ocp), lambda i, k: (k, 0))],
            out_specs=(pl.BlockSpec((tm, ocp), lambda i, k: (i, 0)),
                       pl.BlockSpec((8, ocp), lambda i, k: (i, 0)),
                       pl.BlockSpec((8, ocp), lambda i, k: (i, 0))))

    conv_out, psum, psq = pl.pallas_call(
        kernel,
        out_shape=out_shapes,
        grid_spec=grid_spec,
        compiler_params=pltpu.CompilerParams(
            dimension_semantics=dims,
            vmem_limit_bytes=vmem_limit),
    )(patches_p, wmat)

    # BatchNorm2d training-mode statistics (PyTorch default): biased batch
    # mean/var over (N, H, W) per channel.  Padded rows / channels contribute
    # zeros to the sums and we divide by the true M, so they are harmless.
    csum = jnp.sum(psum, axis=0)[:oc]
    csq = jnp.sum(psq, axis=0)[:oc]
    mean = csum / m
    var = csq / m - mean * mean
    scale = gamma / jnp.sqrt(var + eps)
    shift = beta - mean * scale
    scale_p = jnp.pad(scale, (0, ocp - oc)).reshape(1, ocp)
    shift_p = jnp.pad(shift, (0, ocp - oc)).reshape(1, ocp)

    out_flat = pl.pallas_call(
        functools.partial(bn_act_kernel, neg_slope=neg_slope),
        out_shape=jax.ShapeDtypeStruct((mp, ocp), jnp.float32),
        grid_spec=pltpu.PrefetchScalarGridSpec(
            num_scalar_prefetch=0,
            grid=(nblk,),
            in_specs=[pl.BlockSpec((tm, ocp), lambda i: (i, 0)),
                      pl.BlockSpec((1, ocp), lambda i: (0, 0)),
                      pl.BlockSpec((1, ocp), lambda i: (0, 0))],
            out_specs=pl.BlockSpec((tm, ocp), lambda i: (i, 0))),
        compiler_params=pltpu.CompilerParams(
            dimension_semantics=("parallel",),
            vmem_limit_bytes=vmem_limit),
        input_output_aliases={0: 0},       # normalize in place over conv_out
    )(conv_out, scale_p, shift_p)

    # (M, OCp) -> (N, OC, OH, OW).  The [:m, :oc] slice + NHWC->NCHW transpose
    # stays in XLA so the kernels keep lane-dense (last dim = OCp) stores.
    out = out_flat[:m, :oc].reshape(n, oh, ow, oc).transpose(0, 3, 1, 2)
    return out


def _reference(x, weight, gamma, beta, *, stride, padding, eps=1e-5, neg_slope=0.1):
    """Pure-JAX reference of the same forward pass (correctness check)."""
    y = jax.lax.conv_general_dilated(
        x, weight, window_strides=(stride, stride),
        padding=[(padding, padding), (padding, padding)],
        dimension_numbers=("NCHW", "OIHW", "NCHW"))
    mean = jnp.mean(y, axis=(0, 2, 3))
    var = jnp.mean(jnp.square(y), axis=(0, 2, 3)) - mean * mean
    yhat = (y - mean[None, :, None, None]) / jnp.sqrt(var + eps)[None, :, None, None]
    z = yhat * gamma[None, :, None, None] + beta[None, :, None, None]
    return jnp.where(z > 0, z, neg_slope * z)


if __name__ == "__main__":
    # ConvolutionalLayer(in_channels=4, out_channels=8, kernel_size=3,
    #                    stride=1, padding=1, bias=False)
    in_channels, out_channels, kernel_size, stride, padding = 4, 8, 3, 1, 1
    n, h, w = 2, 16, 16

    key = jax.random.PRNGKey(0)
    kx, kw_ = jax.random.split(key)
    x = jax.random.normal(kx, (n, in_channels, h, w), dtype=jnp.float32)
    weight = 0.1 * jax.random.normal(
        kw_, (out_channels, in_channels, kernel_size, kernel_size),
        dtype=jnp.float32)
    # BatchNorm2d default parameter init: weight (gamma) = 1, bias (beta) = 0.
    gamma = jnp.ones((out_channels,), dtype=jnp.float32)
    beta = jnp.zeros((out_channels,), dtype=jnp.float32)

    fwd = jax.jit(functools.partial(conv_bn_leakyrelu, stride=stride,
                                    padding=padding))
    out = jax.block_until_ready(fwd(x, weight, gamma, beta))

    ref = _reference(x, weight, gamma, beta, stride=stride, padding=padding)
    assert out.shape == (n, out_channels, h, w)
    assert jnp.allclose(out, ref, atol=1e-3, rtol=1e-3), \
        float(jnp.max(jnp.abs(out - ref)))

    print("KERNEL_OK")
</pallas_src>

<mosaic_0001>
module attributes {stable_mosaic.version = 11 : i64} {
  func.func @conv_stats_kernel(%arg0: i32, %arg1: memref<512x128xf32, #tpu.memory_space<vmem>>, %arg2: memref<128x128xf32, #tpu.memory_space<vmem>>, %arg3: memref<512x128xf32, #tpu.memory_space<vmem>>, %arg4: memref<8x128xf32, #tpu.memory_space<vmem>>, %arg5: memref<8x128xf32, #tpu.memory_space<vmem>>) attributes {dimension_semantics = [#tpu.dimension_semantics<parallel>], iteration_bounds = array<i64: 1>, scalar_prefetch = 0 : i64, scratch_operands = 0 : i64, tpu.core_type = #tpu.core_type<tc>, window_params = [{transform_indices = @transform_0, window_bounds = array<i64: 512, 128>}, {pipeline_mode = #tpu.pipeline_mode<synchronous>, transform_indices = @transform_1, window_bounds = array<i64: 128, 128>}, {transform_indices = @transform_2, window_bounds = array<i64: 512, 128>}, {transform_indices = @transform_3, window_bounds = array<i64: 8, 128>}, {transform_indices = @transform_4, window_bounds = array<i64: 8, 128>}]} {
    %c0 = arith.constant 0 : index
    %c0_0 = arith.constant 0 : index
    %0 = vector.load %arg1[%c0, %c0_0] : memref<512x128xf32, #tpu.memory_space<vmem>>, vector<512x128xf32>
    %c0_1 = arith.constant 0 : index
    %c0_2 = arith.constant 0 : index
    %1 = vector.load %arg2[%c0_1, %c0_2] : memref<128x128xf32, #tpu.memory_space<vmem>>, vector<128x128xf32>
    %cst = arith.constant dense<0.000000e+00> : vector<512x128xf32>
    %2 = tpu.matmul %0, %1, %cst {dimension_numbers = #tpu.dot_dimension_numbers<[1], [0], [0], [1], [0, 0, 1, 1], [], []>} : vector<512x128xf32>, vector<128x128xf32>, vector<512x128xf32> -> vector<512x128xf32>
    %c0_3 = arith.constant 0 : index
    %c0_4 = arith.constant 0 : index
    %3 = vector.load %arg3[%c0_3, %c0_4] : memref<512x128xf32, #tpu.memory_space<vmem>>, vector<512x128xf32>
    tpu.vector_store %arg3[%c0_3, %c0_4], %2 {strides = array<i32>} : memref<512x128xf32, #tpu.memory_space<vmem>>, vector<512x128xf32>,
    %4 = vector.shape_cast %2 : vector<512x128xf32> to vector<64x8x128xf32>
    %cst_5 = arith.constant dense<0.000000e+00> : vector<8x128xf32>
    %5 = vector.multi_reduction <add>, %4, %cst_5 [0] : vector<64x8x128xf32> to vector<8x128xf32>
    %c0_6 = arith.constant 0 : index
    %c0_7 = arith.constant 0 : index
    %6 = vector.load %arg4[%c0_6, %c0_7] : memref<8x128xf32, #tpu.memory_space<vmem>>, vector<8x128xf32>
    tpu.vector_store %arg4[%c0_6, %c0_7], %5 {strides = array<i32>} : memref<8x128xf32, #tpu.memory_space<vmem>>, vector<8x128xf32>,
    %7 = arith.mulf %4, %4 : vector<64x8x128xf32>
    %cst_8 = arith.constant dense<0.000000e+00> : vector<8x128xf32>
    %8 = vector.multi_reduction <add>, %7, %cst_8 [0] : vector<64x8x128xf32> to vector<8x128xf32>
    %c0_9 = arith.constant 0 : index
    %c0_10 = arith.constant 0 : index
    %9 = vector.load %arg5[%c0_9, %c0_10] : memref<8x128xf32, #tpu.memory_space<vmem>>, vector<8x128xf32>
    tpu.vector_store %arg5[%c0_9, %c0_10], %8 {strides = array<i32>} : memref<8x128xf32, #tpu.memory_space<vmem>>, vector<8x128xf32>,
    return
  }
  func.func @transform_0(%arg0: i32) -> (i32, i32) {
    %c0_i32 = arith.constant 0 : i32
    %c0_i32_0 = arith.constant 0 : i32
    return %arg0, %c0_i32 : i32, i32
  }
  func.func @transform_1(%arg0: i32) -> (i32, i32) {
    %c0_i32 = arith.constant 0 : i32
    %c0_i32_0 = arith.constant 0 : i32
    %c0_i32_1 = arith.constant 0 : i32
    return %c0_i32, %c0_i32_0 : i32, i32
  }
  func.func @transform_2(%arg0: i32) -> (i32, i32) {
    %c0_i32 = arith.constant 0 : i32
    %c0_i32_0 = arith.constant 0 : i32
    return %arg0, %c0_i32 : i32, i32
  }
  func.func @transform_3(%arg0: i32) -> (i32, i32) {
    %c0_i32 = arith.constant 0 : i32
    %c0_i32_0 = arith.constant 0 : i32
    return %arg0, %c0_i32 : i32, i32
  }
  func.func @transform_4(%arg0: i32) -> (i32, i32) {
    %c0_i32 = arith.constant 0 : i32
    %c0_i32_0 = arith.constant 0 : i32
    return %arg0, %c0_i32 : i32, i32
  }
}

module attributes {stable_mosaic.version = 11 : i64} {
  func.func @bn_act_kernel(%arg0: i32, %arg1: memref<512x128xf32, #tpu.memory_space<vmem>>, %arg2: memref<1x128xf32, #tpu.memory_space<vmem>>, %arg3: memref<1x128xf32, #tpu.memory_space<vmem>>, %arg4: memref<512x128xf32, #tpu.memory_space<vmem>>) attributes {dimension_semantics = [#tpu.dimension_semantics<parallel>], iteration_bounds = array<i64: 1>, scalar_prefetch = 0 : i64, scratch_operands = 0 : i64, tpu.core_type = #tpu.core_type<tc>, window_params = [{transform_indices = @transform_0, window_bounds = array<i64: 512, 128>}, {pipeline_mode = #tpu.pipeline_mode<synchronous>, transform_indices = @transform_1, window_bounds = array<i64: 1, 128>}, {pipeline_mode = #tpu.pipeline_mode<synchronous>, transform_indices = @transform_2, window_bounds = array<i64: 1, 128>}, {transform_indices = @transform_3, window_bounds = array<i64: 512, 128>}]} {
    %c0 = arith.constant 0 : index
    %c0_0 = arith.constant 0 : index
    %0 = vector.load %arg1[%c0, %c0_0] : memref<512x128xf32, #tpu.memory_space<vmem>>, vector<512x128xf32>
    %c0_1 = arith.constant 0 : index
    %c0_2 = arith.constant 0 : index
    %1 = vector.load %arg2[%c0_1, %c0_2] : memref<1x128xf32, #tpu.memory_space<vmem>>, vector<1x128xf32>
    %2 = vector.broadcast %1 : vector<1x128xf32> to vector<512x128xf32>
    %3 = arith.mulf %0, %2 : vector<512x128xf32>
    %c0_3 = arith.constant 0 : index
    %c0_4 = arith.constant 0 : index
    %4 = vector.load %arg3[%c0_3, %c0_4] : memref<1x128xf32, #tpu.memory_space<vmem>>, vector<1x128xf32>
    %5 = vector.broadcast %4 : vector<1x128xf32> to vector<512x128xf32>
    %6 = arith.addf %3, %5 : vector<512x128xf32>
    %cst = arith.constant 0.000000e+00 : f32
    %7 = vector.broadcast %cst : f32 to vector<512x128xf32>
    %8 = arith.cmpf ogt, %6, %7 : vector<512x128xf32>
    %cst_5 = arith.constant 1.000000e-01 : f32
    %9 = vector.broadcast %cst_5 : f32 to vector<512x128xf32>
    %10 = arith.mulf %9, %6 : vector<512x128xf32>
    %11 = arith.select %8, %6, %10 : vector<512x128xi1>, vector<512x128xf32>
    %c0_6 = arith.constant 0 : index
    %c0_7 = arith.constant 0 : index
    %12 = vector.load %arg4[%c0_6, %c0_7] : memref<512x128xf32, #tpu.memory_space<vmem>>, vector<512x128xf32>
    tpu.vector_store %arg4[%c0_6, %c0_7], %11 {strides = array<i32>} : memref<512x128xf32, #tpu.memory_space<vmem>>, vector<512x128xf32>,
    return
  }
  func.func @transform_0(%arg0: i32) -> (i32, i32) {
    %c0_i32 = arith.constant 0 : i32
    %c0_i32_0 = arith.constant 0 : i32
    return %arg0, %c0_i32 : i32, i32
  }
  func.func @transform_1(%arg0: i32) -> (i32, i32) {
    %c0_i32 = arith.constant 0 : i32
    %c0_i32_0 = arith.constant 0 : i32
    %c0_i32_1 = arith.constant 0 : i32
    return %c0_i32, %c0_i32_0 : i32, i32
  }
  func.func @transform_2(%arg0: i32) -> (i32, i32) {
    %c0_i32 = arith.constant 0 : i32
    %c0_i32_0 = arith.constant 0 : i32
    %c0_i32_1 = arith.constant 0 : i32
    return %c0_i32, %c0_i32_0 : i32, i32
  }
  func.func @transform_3(%arg0: i32) -> (i32, i32) {
    %c0_i32 = arith.constant 0 : i32
    %c0_i32_0 = arith.constant 0 : i32
    return %arg0, %c0_i32 : i32, i32
  }
}

</mosaic_0001>

<llo_original>
// kernel: conv_bn_leakyrelu.2
$region0: #{conv_bn_leakyrelu.2}
  #allocation0 [shape = 'u32[]', space=smem, size = 0x4, offset = 0x4, fixed_abs, tag = 'smem constant byte address 0x4 - core index']
  #allocation1 [shape = 'u32[144,128]{1,0:T(1,128)}', space=vmem, size = 0x12000, scoped, tag = 'internal scratch']
  %s0 = inlined_call_operand.vmem [shape: f32[512,128], index: 0, kind: input, shape index: {}]
  %s1 = inlined_call_operand.vmem [shape: f32[128,128], index: 1, kind: input, shape index: {}]
  %s2 = inlined_call_operand.vmem [shape: f32[512,128], index: 2, kind: output, shape index: {0}]
  %s3 = inlined_call_operand.vmem [shape: f32[8,128], index: 3, kind: output, shape index: {1}]
  %s4 = inlined_call_operand.vmem [shape: f32[8,128], index: 4, kind: output, shape index: {2}]
  %5 = xla_tuple %s2, %s3, %s4
  %s6 = sld [smem:[#allocation0]]
  $region34: #{conv_bn_leakyrelu.2} parent=0
    _
  %s8 = ssub.s32 1, %s6
  %s9 = scalar_select 0, %s8, %s6
  // Predicated region
  $region2: #{conv_bn_leakyrelu.2} parent=0 // pred_check
    _
  $region3: #{conv_bn_leakyrelu.2} parent=0 // pred_check_branch
    %11 = sbr.rel (0) target = $region5
  $region4: #{conv_bn_leakyrelu.2} parent=0 // pred_region
    _
  $region5: #{conv_bn_leakyrelu.2} parent=0 // pred_fallthru
    _
  // Predicated region
  $region6: #{conv_bn_leakyrelu.2} parent=0 // pred_check
    _
  $region7: #{conv_bn_leakyrelu.2} parent=0 // pred_check_branch
    %13 = sbr.rel (0) target = $region9
  $region8: #{conv_bn_leakyrelu.2} parent=0 // pred_region
    _
  $region9: #{conv_bn_leakyrelu.2} parent=0 // pred_fallthru
    _
  %v14 = vld [vmem:[%s0] sm:$0xff]
  %v15 = vld [vmem:[%s0 + $0x8] sm:$0xff]
  %v16 = vld [vmem:[%s0 + $0x10] sm:$0xff]
  %v17 = vld [vmem:[%s0 + $0x18] sm:$0xff]
  %v18 = vld [vmem:[%s0 + $0x20] sm:$0xff]
  %v19 = vld [vmem:[%s0 + $0x28] sm:$0xff]
  %v20 = vld [vmem:[%s0 + $0x30] sm:$0xff]
  %v21 = vld [vmem:[%s0 + $0x38] sm:$0xff]
  %v22 = vld [vmem:[%s0 + $0x40] sm:$0xff]
  %v23 = vld [vmem:[%s0 + $0x48] sm:$0xff]
  %v24 = vld [vmem:[%s0 + $0x50] sm:$0xff]
  %v25 = vld [vmem:[%s0 + $0x58] sm:$0xff]
  %v26 = vld [vmem:[%s0 + $0x60] sm:$0xff]
  %v27 = vld [vmem:[%s0 + $0x68] sm:$0xff]
  %v28 = vld [vmem:[%s0 + $0x70] sm:$0xff]
  %v29 = vld [vmem:[%s0 + $0x78] sm:$0xff]
  %v30 = vld [vmem:[%s0 + $0x80] sm:$0xff]
  %v31 = vld [vmem:[%s0 + $0x88] sm:$0xff]
  %v32 = vld [vmem:[%s0 + $0x90] sm:$0xff]
  %v33 = vld [vmem:[%s0 + $0x98] sm:$0xff]
  %v34 = vld [vmem:[%s0 + $0xa0] sm:$0xff]
  %v35 = vld [vmem:[%s0 + $0xa8] sm:$0xff]
  %v36 = vld [vmem:[%s0 + $0xb0] sm:$0xff]
  %v37 = vld [vmem:[%s0 + $0xb8] sm:$0xff]
  %v38 = vld [vmem:[%s0 + $0xc0] sm:$0xff]
  %v39 = vld [vmem:[%s0 + $0xc8] sm:$0xff]
  %v40 = vld [vmem:[%s0 + $0xd0] sm:$0xff]
  %v41 = vld [vmem:[%s0 + $0xd8] sm:$0xff]
  %v42 = vld [vmem:[%s0 + $0xe0] sm:$0xff]
  %v43 = vld [vmem:[%s0 + $0xe8] sm:$0xff]
  %v44 = vld [vmem:[%s0 + $0xf0] sm:$0xff]
  %v45 = vld [vmem:[%s0 + $0xf8] sm:$0xff]
  %v46 = vld [vmem:[%s0 + $0x100] sm:$0xff]
  %v47 = vld [vmem:[%s0 + $0x108] sm:$0xff]
  %v48 = vld [vmem:[%s0 + $0x110] sm:$0xff]
  %v49 = vld [vmem:[%s0 + $0x118] sm:$0xff]
  %v50 = vld [vmem:[%s0 + $0x120] sm:$0xff]
  %v51 = vld [vmem:[%s0 + $0x128] sm:$0xff]
  %v52 = vld [vmem:[%s0 + $0x130] sm:$0xff]
  %v53 = vld [vmem:[%s0 + $0x138] sm:$0xff]
  %v54 = vld [vmem:[%s0 + $0x140] sm:$0xff]
  %v55 = vld [vmem:[%s0 + $0x148] sm:$0xff]
  %v56 = vld [vmem:[%s0 + $0x150] sm:$0xff]
  %v57 = vld [vmem:[%s0 + $0x158] sm:$0xff]
  %v58 = vld [vmem:[%s0 + $0x160] sm:$0xff]
  %v59 = vld [vmem:[%s0 + $0x168] sm:$0xff]
  %v60 = vld [vmem:[%s0 + $0x170] sm:$0xff]
  %v61 = vld [vmem:[%s0 + $0x178] sm:$0xff]
  %v62 = vld [vmem:[%s0 + $0x180] sm:$0xff]
  %v63 = vld [vmem:[%s0 + $0x188] sm:$0xff]
  %v64 = vld [vmem:[%s0 + $0x190] sm:$0xff]
  %v65 = vld [vmem:[%s0 + $0x198] sm:$0xff]
  %v66 = vld [vmem:[%s0 + $0x1a0] sm:$0xff]
  %v67 = vld [vmem:[%s0 + $0x1a8] sm:$0xff]
  %v68 = vld [vmem:[%s0 + $0x1b0] sm:$0xff]
  %v69 = vld [vmem:[%s0 + $0x1b8] sm:$0xff]
  %v70 = vld [vmem:[%s0 + $0x1c0] sm:$0xff]
  %v71 = vld [vmem:[%s0 + $0x1c8] sm:$0xff]
  %v72 = vld [vmem:[%s0 + $0x1d0] sm:$0xff]
  %v73 = vld [vmem:[%s0 + $0x1d8] sm:$0xff]
  %v74 = vld [vmem:[%s0 + $0x1e0] sm:$0xff]
  %v75 = vld [vmem:[%s0 + $0x1e8] sm:$0xff]
  %v76 = vld [vmem:[%s0 + $0x1f0] sm:$0xff]
  %v77 = vld [vmem:[%s0 + $0x1f8] sm:$0xff]
  %v78 = vld [vmem:[%s1] sm:$0xff]
  %v79 = vld [vmem:[%s1 + $0x8] sm:$0xff]
  %v80 = vld [vmem:[%s1 + $0x10] sm:$0xff]
  %v81 = vld [vmem:[%s1 + $0x18] sm:$0xff]
  %v82 = vld [vmem:[%s1 + $0x20] sm:$0xff]
  %v83 = vld [vmem:[%s1 + $0x28] sm:$0xff]
  %v84 = vld [vmem:[%s1 + $0x30] sm:$0xff]
  %v85 = vld [vmem:[%s1 + $0x38] sm:$0xff]
  %v86 = vld [vmem:[%s1 + $0x40] sm:$0xff]
  %v87 = vld [vmem:[%s1 + $0x48] sm:$0xff]
  %v88 = vld [vmem:[%s1 + $0x50] sm:$0xff]
  %v89 = vld [vmem:[%s1 + $0x58] sm:$0xff]
  %v90 = vld [vmem:[%s1 + $0x60] sm:$0xff]
  %v91 = vld [vmem:[%s1 + $0x68] sm:$0xff]
  %v92 = vld [vmem:[%s1 + $0x70] sm:$0xff]
  %v93 = vld [vmem:[%s1 + $0x78] sm:$0xff]
  %94 = vmatprep.subr.mxu0 0.0
  %95 = vmatpush1.msra.mxu0 %v93
  %96 = vmatprep.subr.mxu0 0.0
  %97 = vmatpush1.msra.mxu0 %v92
  %98 = vmatprep.subr.mxu0 0.0
  %99 = vmatpush1.msra.mxu0 %v91
  %100 = vmatprep.subr.mxu0 0.0
  %101 = vmatpush1.msra.mxu0 %v90
  %102 = vmatprep.subr.mxu0 0.0
  %103 = vmatpush1.msra.mxu0 %v89
  %104 = vmatprep.subr.mxu0 0.0
  %105 = vmatpush1.msra.mxu0 %v88
  %106 = vmatprep.subr.mxu0 0.0
  %107 = vmatpush1.msra.mxu0 %v87
  %108 = vmatprep.subr.mxu0 0.0
  %109 = vmatpush1.msra.mxu0 %v86
  %110 = vmatprep.subr.mxu0 0.0
  %111 = vmatpush1.msra.mxu0 %v85
  %112 = vmatprep.subr.mxu0 0.0
  %113 = vmatpush1.msra.mxu0 %v84
  %114 = vmatprep.subr.mxu0 0.0
  %115 = vmatpush1.msra.mxu0 %v83
  %116 = vmatprep.subr.mxu0 0.0
  %117 = vmatpush1.msra.mxu0 %v82
  %118 = vmatprep.subr.mxu0 0.0
  %119 = vmatpush1.msra.mxu0 %v81
  %120 = vmatprep.subr.mxu0 0.0
  %121 = vmatpush1.msra.mxu0 %v80
  %122 = vmatprep.subr.mxu0 0.0
  %123 = vmatpush1.msra.mxu0 %v79
  %124 = vmatprep.subr.mxu0 0.0
  %125 = vmatpush1.msra.mxu0 %v78
  %126 = vmatprep.subr.mxu0 0.0
  %127 = vmatpush2.msra.mxu0 0.0
  %128 = vmatprep.subr.mxu0 0.0
  %129 = vmatpush2.msra.mxu0 0.0
  %130 = vmatprep.subr.mxu0 0.0
  %131 = vmatpush2.msra.mxu0 0.0
  %132 = vmatprep.subr.mxu0 0.0
  %133 = vmatpush2.msra.mxu0 0.0
  %134 = vmatprep.subr.mxu0 0.0
  %135 = vmatpush2.msra.mxu0 0.0
  %136 = vmatprep.subr.mxu0 0.0
  %137 = vmatpush2.msra.mxu0 0.0
  %138 = vmatprep.subr.mxu0 0.0
  %139 = vmatpush2.msra.mxu0 0.0
  %140 = vmatprep.subr.mxu0 0.0
  %141 = vmatpush2.msra.mxu0 0.0
  %142 = vmatprep.subr.mxu0 0.0
  %143 = vmatpush2.msra.mxu0 0.0
  %144 = vmatprep.subr.mxu0 0.0
  %145 = vmatpush2.msra.mxu0 0.0
  %146 = vmatprep.subr.mxu0 0.0
  %147 = vmatpush2.msra.mxu0 0.0
  %148 = vmatprep.subr.mxu0 0.0
  %149 = vmatpush2.msra.mxu0 0.0
  %150 = vmatprep.subr.mxu0 0.0
  %151 = vmatpush2.msra.mxu0 0.0
  %152 = vmatprep.subr.mxu0 0.0
  %153 = vmatpush2.msra.mxu0 0.0
  %154 = vmatprep.subr.mxu0 0.0
  %155 = vmatpush2.msra.mxu0 0.0
  %156 = vmatprep.subr.mxu0 0.0
  %157 = vmatpush2.msra.mxu0 0.0
  %158 = vmatprep.mubr.f32.mxu0 0.0
  %159 = vmatmul.mubr.f32.gmra.mxu0 %v14
  %v160 = vpop.f32.mrf.mxu0
  %v161 = vadd.f32 0.0, %v160
  %v162 = vpop.f32.mrf.mxu0
  %163 = vmatprep.mubr.f32.mxu0 0.0
  %164 = vmatmul.mubr.f32.gmra.mxu0 %v15
  %v165 = vpop.f32.mrf.mxu0
  %v166 = vadd.f32 0.0, %v165
  %v167 = vpop.f32.mrf.mxu0
  %168 = vmatprep.mubr.f32.mxu0 0.0
  %169 = vmatmul.mubr.f32.gmra.mxu0 %v16
  %v170 = vpop.f32.mrf.mxu0
  %v171 = vadd.f32 0.0, %v170
  %v172 = vpop.f32.mrf.mxu0
  %173 = vmatprep.mubr.f32.mxu0 0.0
  %174 = vmatmul.mubr.f32.gmra.mxu0 %v17
  %v175 = vpop.f32.mrf.mxu0
  %v176 = vadd.f32 0.0, %v175
  %v177 = vpop.f32.mrf.mxu0
  %178 = vmatprep.mubr.f32.mxu0 0.0
  %179 = vmatmul.mubr.f32.gmra.mxu0 %v18
  %v180 = vpop.f32.mrf.mxu0
  %v181 = vadd.f32 0.0, %v180
  %v182 = vpop.f32.mrf.mxu0
  %183 = vmatprep.mubr.f32.mxu0 0.0
  %184 = vmatmul.mubr.f32.gmra.mxu0 %v19
  %v185 = vpop.f32.mrf.mxu0
  %v186 = vadd.f32 0.0, %v185
  %v187 = vpop.f32.mrf.mxu0
  %188 = vmatprep.mubr.f32.mxu0 0.0
  %189 = vmatmul.mubr.f32.gmra.mxu0 %v20
  %v190 = vpop.f32.mrf.mxu0
  %v191 = vadd.f32 0.0, %v190
  %v192 = vpop.f32.mrf.mxu0
  %193 = vmatprep.mubr.f32.mxu0 0.0
  %194 = vmatmul.mubr.f32.gmra.mxu0 %v21
  %v195 = vpop.f32.mrf.mxu0
  %v196 = vadd.f32 0.0, %v195
  %v197 = vpop.f32.mrf.mxu0
  %198 = vmatprep.mubr.f32.mxu0 0.0
  %199 = vmatmul.mubr.f32.gmra.mxu0 %v22
  %v200 = vpop.f32.mrf.mxu0
  %v201 = vadd.f32 0.0, %v200
  %v202 = vpop.f32.mrf.mxu0
  %203 = vmatprep.mubr.f32.mxu0 0.0
  %204 = vmatmul.mubr.f32.gmra.mxu0 %v23
  %v205 = vpop.f32.mrf.mxu0
  %v206 = vadd.f32 0.0, %v205
  %v207 = vpop.f32.mrf.mxu0
  %208 = vmatprep.mubr.f32.mxu0 0.0
  %209 = vmatmul.mubr.f32.gmra.mxu0 %v24
  %v210 = vpop.f32.mrf.mxu0
  %v211 = vadd.f32 0.0, %v210
  %v212 = vpop.f32.mrf.mxu0
  %213 = vmatprep.mubr.f32.mxu0 0.0
  %214 = vmatmul.mubr.f32.gmra.mxu0 %v25
  %v215 = vpop.f32.mrf.mxu0
  %v216 = vadd.f32 0.0, %v215
  %v217 = vpop.f32.mrf.mxu0
  %218 = vmatprep.mubr.f32.mxu0 0.0
  %219 = vmatmul.mubr.f32.gmra.mxu0 %v26
  %v220 = vpop.f32.mrf.mxu0
  %v221 = vadd.f32 0.0, %v220
  %v222 = vpop.f32.mrf.mxu0
  %223 = vmatprep.mubr.f32.mxu0 0.0
  %224 = vmatmul.mubr.f32.gmra.mxu0 %v27
  %v225 = vpop.f32.mrf.mxu0
  %v226 = vadd.f32 0.0, %v225
  %v227 = vpop.f32.mrf.mxu0
  %228 = vmatprep.mubr.f32.mxu0 0.0
  %229 = vmatmul.mubr.f32.gmra.mxu0 %v28
  %v230 = vpop.f32.mrf.mxu0
  %v231 = vadd.f32 0.0, %v230
  %v232 = vpop.f32.mrf.mxu0
  %233 = vmatprep.mubr.f32.mxu0 0.0
  %234 = vmatmul.mubr.f32.gmra.mxu0 %v29
  %v235 = vpop.f32.mrf.mxu0
  %v236 = vadd.f32 0.0, %v235
  %v237 = vpop.f32.mrf.mxu0
  %238 = vmatprep.mubr.f32.mxu0 0.0
  %239 = vmatmul.mubr.f32.gmra.mxu0 %v30
  %v240 = vpop.f32.mrf.mxu0
  %v241 = vadd.f32 0.0, %v240
  %v242 = vpop.f32.mrf.mxu0
  %243 = vmatprep.mubr.f32.mxu0 0.0
  %244 = vmatmul.mubr.f32.gmra.mxu0 %v31
  %v245 = vpop.f32.mrf.mxu0
  %v246 = vadd.f32 0.0, %v245
  %v247 = vpop.f32.mrf.mxu0
  %248 = vmatprep.mubr.f32.mxu0 0.0
  %249 = vmatmul.mubr.f32.gmra.mxu0 %v32
  %v250 = vpop.f32.mrf.mxu0
  %v251 = vadd.f32 0.0, %v250
  %v252 = vpop.f32.mrf.mxu0
  %253 = vmatprep.mubr.f32.mxu0 0.0
  %254 = vmatmul.mubr.f32.gmra.mxu0 %v33
  %v255 = vpop.f32.mrf.mxu0
  %v256 = vadd.f32 0.0, %v255
  %v257 = vpop.f32.mrf.mxu0
  %258 = vmatprep.mubr.f32.mxu0 0.0
  %259 = vmatmul.mubr.f32.gmra.mxu0 %v34
  %v260 = vpop.f32.mrf.mxu0
  %v261 = vadd.f32 0.0, %v260
  %v262 = vpop.f32.mrf.mxu0
  %263 = vmatprep.mubr.f32.mxu0 0.0
  %264 = vmatmul.mubr.f32.gmra.mxu0 %v35
  %v265 = vpop.f32.mrf.mxu0
  %v266 = vadd.f32 0.0, %v265
  %v267 = vpop.f32.mrf.mxu0
  %268 = vmatprep.mubr.f32.mxu0 0.0
  %269 = vmatmul.mubr.f32.gmra.mxu0 %v36
  %v270 = vpop.f32.mrf.mxu0
  %v271 = vadd.f32 0.0, %v270
  %v272 = vpop.f32.mrf.mxu0
  %273 = vmatprep.mubr.f32.mxu0 0.0
  %274 = vmatmul.mubr.f32.gmra.mxu0 %v37
  %v275 = vpop.f32.mrf.mxu0
  %v276 = vadd.f32 0.0, %v275
  %v277 = vpop.f32.mrf.mxu0
  %278 = vmatprep.mubr.f32.mxu0 0.0
  %279 = vmatmul.mubr.f32.gmra.mxu0 %v38
  %v280 = vpop.f32.mrf.mxu0
  %v281 = vadd.f32 0.0, %v280
  %v282 = vpop.f32.mrf.mxu0
  %283 = vmatprep.mubr.f32.mxu0 0.0
  %284 = vmatmul.mubr.f32.gmra.mxu0 %v39
  %v285 = vpop.f32.mrf.mxu0
  %v286 = vadd.f32 0.0, %v285
  %v287 = vpop.f32.mrf.mxu0
  %288 = vmatprep.mubr.f32.mxu0 0.0
  %289 = vmatmul.mubr.f32.gmra.mxu0 %v40
  %v290 = vpop.f32.mrf.mxu0
  %v291 = vadd.f32 0.0, %v290
  %v292 = vpop.f32.mrf.mxu0
  %293 = vmatprep.mubr.f32.mxu0 0.0
  %294 = vmatmul.mubr.f32.gmra.mxu0 %v41
  %v295 = vpop.f32.mrf.mxu0
  %v296 = vadd.f32 0.0, %v295
  %v297 = vpop.f32.mrf.mxu0
  %298 = vmatprep.mubr.f32.mxu0 0.0
  %299 = vmatmul.mubr.f32.gmra.mxu0 %v42
  %v300 = vpop.f32.mrf.mxu0
  %v301 = vadd.f32 0.0, %v300
  %v302 = vpop.f32.mrf.mxu0
  %303 = vmatprep.mubr.f32.mxu0 0.0
  %304 = vmatmul.mubr.f32.gmra.mxu0 %v43
  %v305 = vpop.f32.mrf.mxu0
  %v306 = vadd.f32 0.0, %v305
  %v307 = vpop.f32.mrf.mxu0
  %308 = vmatprep.mubr.f32.mxu0 0.0
  %309 = vmatmul.mubr.f32.gmra.mxu0 %v44
  %v310 = vpop.f32.mrf.mxu0
  %v311 = vadd.f32 0.0, %v310
  %v312 = vpop.f32.mrf.mxu0
  %313 = vmatprep.mubr.f32.mxu0 0.0
  %314 = vmatmul.mubr.f32.gmra.mxu0 %v45
  %v315 = vpop.f32.mrf.mxu0
  %v316 = vadd.f32 0.0, %v315
  %v317 = vpop.f32.mrf.mxu0
  %318 = vmatprep.mubr.f32.mxu0 0.0
  %319 = vmatmul.mubr.f32.gmra.mxu0 %v46
  %v320 = vpop.f32.mrf.mxu0
  %v321 = vadd.f32 0.0, %v320
  %v322 = vpop.f32.mrf.mxu0
  %323 = vmatprep.mubr.f32.mxu0 0.0
  %324 = vmatmul.mubr.f32.gmra.mxu0 %v47
  %v325 = vpop.f32.mrf.mxu0
  %v326 = vadd.f32 0.0, %v325
  %v327 = vpop.f32.mrf.mxu0
  %328 = vmatprep.mubr.f32.mxu0 0.0
  %329 = vmatmul.mubr.f32.gmra.mxu0 %v48
  %v330 = vpop.f32.mrf.mxu0
  %v331 = vadd.f32 0.0, %v330
  %v332 = vpop.f32.mrf.mxu0
  %333 = vmatprep.mubr.f32.mxu0 0.0
  %334 = vmatmul.mubr.f32.gmra.mxu0 %v49
  %v335 = vpop.f32.mrf.mxu0
  %v336 = vadd.f32 0.0, %v335
  %v337 = vpop.f32.mrf.mxu0
  %338 = vmatprep.mubr.f32.mxu0 0.0
  %339 = vmatmul.mubr.f32.gmra.mxu0 %v50
  %v340 = vpop.f32.mrf.mxu0
  %v341 = vadd.f32 0.0, %v340
  %v342 = vpop.f32.mrf.mxu0
  %343 = vmatprep.mubr.f32.mxu0 0.0
  %344 = vmatmul.mubr.f32.gmra.mxu0 %v51
  %v345 = vpop.f32.mrf.mxu0
  %v346 = vadd.f32 0.0, %v345
  %v347 = vpop.f32.mrf.mxu0
  %348 = vmatprep.mubr.f32.mxu0 0.0
  %349 = vmatmul.mubr.f32.gmra.mxu0 %v52
  %v350 = vpop.f32.mrf.mxu0
  %v351 = vadd.f32 0.0, %v350
  %v352 = vpop.f32.mrf.mxu0
  %353 = vmatprep.mubr.f32.mxu0 0.0
  %354 = vmatmul.mubr.f32.gmra.mxu0 %v53
  %v355 = vpop.f32.mrf.mxu0
  %v356 = vadd.f32 0.0, %v355
  %v357 = vpop.f32.mrf.mxu0
  %358 = vmatprep.mubr.f32.mxu0 0.0
  %359 = vmatmul.mubr.f32.gmra.mxu0 %v54
  %v360 = vpop.f32.mrf.mxu0
  %v361 = vadd.f32 0.0, %v360
  %v362 = vpop.f32.mrf.mxu0
  %363 = vmatprep.mubr.f32.mxu0 0.0
  %364 = vmatmul.mubr.f32.gmra.mxu0 %v55
  %v365 = vpop.f32.mrf.mxu0
  %v366 = vadd.f32 0.0, %v365
  %v367 = vpop.f32.mrf.mxu0
  %368 = vmatprep.mubr.f32.mxu0 0.0
  %369 = vmatmul.mubr.f32.gmra.mxu0 %v56
  %v370 = vpop.f32.mrf.mxu0
  %v371 = vadd.f32 0.0, %v370
  %v372 = vpop.f32.mrf.mxu0
  %373 = vmatprep.mubr.f32.mxu0 0.0
  %374 = vmatmul.mubr.f32.gmra.mxu0 %v57
  %v375 = vpop.f32.mrf.mxu0
  %v376 = vadd.f32 0.0, %v375
  %v377 = vpop.f32.mrf.mxu0
  %378 = vmatprep.mubr.f32.mxu0 0.0
  %379 = vmatmul.mubr.f32.gmra.mxu0 %v58
  %v380 = vpop.f32.mrf.mxu0
  %v381 = vadd.f32 0.0, %v380
  %v382 = vpop.f32.mrf.mxu0
  %383 = vmatprep.mubr.f32.mxu0 0.0
  %384 = vmatmul.mubr.f32.gmra.mxu0 %v59
  %v385 = vpop.f32.mrf.mxu0
  %v386 = vadd.f32 0.0, %v385
  %v387 = vpop.f32.mrf.mxu0
  %388 = vmatprep.mubr.f32.mxu0 0.0
  %389 = vmatmul.mubr.f32.gmra.mxu0 %v60
  %v390 = vpop.f32.mrf.mxu0
  %v391 = vadd.f32 0.0, %v390
  %v392 = vpop.f32.mrf.mxu0
  %393 = vmatprep.mubr.f32.mxu0 0.0
  %394 = vmatmul.mubr.f32.gmra.mxu0 %v61
  %v395 = vpop.f32.mrf.mxu0
  %v396 = vadd.f32 0.0, %v395
  %v397 = vpop.f32.mrf.mxu0
  %398 = vmatprep.mubr.f32.mxu0 0.0
  %399 = vmatmul.mubr.f32.gmra.mxu0 %v62
  %v400 = vpop.f32.mrf.mxu0
  %v401 = vadd.f32 0.0, %v400
  %v402 = vpop.f32.mrf.mxu0
  %403 = vmatprep.mubr.f32.mxu0 0.0
  %404 = vmatmul.mubr.f32.gmra.mxu0 %v63
  %v405 = vpop.f32.mrf.mxu0
  %v406 = vadd.f32 0.0, %v405
  %v407 = vpop.f32.mrf.mxu0
  %408 = vmatprep.mubr.f32.mxu0 0.0
  %409 = vmatmul.mubr.f32.gmra.mxu0 %v64
  %v410 = vpop.f32.mrf.mxu0
  %v411 = vadd.f32 0.0, %v410
  %v412 = vpop.f32.mrf.mxu0
  %413 = vmatprep.mubr.f32.mxu0 0.0
  %414 = vmatmul.mubr.f32.gmra.mxu0 %v65
  %v415 = vpop.f32.mrf.mxu0
  %v416 = vadd.f32 0.0, %v415
  %v417 = vpop.f32.mrf.mxu0
  %418 = vmatprep.mubr.f32.mxu0 0.0
  %419 = vmatmul.mubr.f32.gmra.mxu0 %v66
  %v420 = vpop.f32.mrf.mxu0
  %v421 = vadd.f32 0.0, %v420
  %v422 = vpop.f32.mrf.mxu0
  %423 = vmatprep.mubr.f32.mxu0 0.0
  %424 = vmatmul.mubr.f32.gmra.mxu0 %v67
  %v425 = vpop.f32.mrf.mxu0
  %v426 = vadd.f32 0.0, %v425
  %v427 = vpop.f32.mrf.mxu0
  %428 = vmatprep.mubr.f32.mxu0 0.0
  %429 = vmatmul.mubr.f32.gmra.mxu0 %v68
  %v430 = vpop.f32.mrf.mxu0
  %v431 = vadd.f32 0.0, %v430
  %v432 = vpop.f32.mrf.mxu0
  %433 = vmatprep.mubr.f32.mxu0 0.0
  %434 = vmatmul.mubr.f32.gmra.mxu0 %v69
  %v435 = vpop.f32.mrf.mxu0
  %v436 = vadd.f32 0.0, %v435
  %v437 = vpop.f32.mrf.mxu0
  %438 = vmatprep.mubr.f32.mxu0 0.0
  %439 = vmatmul.mubr.f32.gmra.mxu0 %v70
  %v440 = vpop.f32.mrf.mxu0
  %v441 = vadd.f32 0.0, %v440
  %v442 = vpop.f32.mrf.mxu0
  %443 = vmatprep.mubr.f32.mxu0 0.0
  %444 = vmatmul.mubr.f32.gmra.mxu0 %v71
  %v445 = vpop.f32.mrf.mxu0
  %v446 = vadd.f32 0.0, %v445
  %v447 = vpop.f32.mrf.mxu0
  %448 = vmatprep.mubr.f32.mxu0 0.0
  %449 = vmatmul.mubr.f32.gmra.mxu0 %v72
  %v450 = vpop.f32.mrf.mxu0
  %v451 = vadd.f32 0.0, %v450
  %v452 = vpop.f32.mrf.mxu0
  %453 = vmatprep.mubr.f32.mxu0 0.0
  %454 = vmatmul.mubr.f32.gmra.mxu0 %v73
  %v455 = vpop.f32.mrf.mxu0
  %v456 = vadd.f32 0.0, %v455
  %v457 = vpop.f32.mrf.mxu0
  %458 = vmatprep.mubr.f32.mxu0 0.0
  %459 = vmatmul.mubr.f32.gmra.mxu0 %v74
  %v460 = vpop.f32.mrf.mxu0
  %v461 = vadd.f32 0.0, %v460
  %v462 = vpop.f32.mrf.mxu0
  %463 = vmatprep.mubr.f32.mxu0 0.0
  %464 = vmatmul.mubr.f32.gmra.mxu0 %v75
  %v465 = vpop.f32.mrf.mxu0
  %v466 = vadd.f32 0.0, %v465
  %v467 = vpop.f32.mrf.mxu0
  %468 = vmatprep.mubr.f32.mxu0 0.0
  %469 = vmatmul.mubr.f32.gmra.mxu0 %v76
  %v470 = vpop.f32.mrf.mxu0
  %v471 = vadd.f32 0.0, %v470
  %v472 = vpop.f32.mrf.mxu0
  %473 = vmatprep.mubr.f32.mxu0 0.0
  %474 = vmatmul.mubr.f32.gmra.mxu0 %v77
  %v475 = vpop.f32.mrf.mxu0
  %v476 = vadd.f32 0.0, %v475
  %v477 = vpop.f32.mrf.mxu0
  %478 = vdwg.mxu0
  %479 = vst [vmem:[%s2] sm:$0xff] %v161
  %480 = vst [vmem:[%s2 + $0x8] sm:$0xff] %v166
  %481 = vst [vmem:[%s2 + $0x10] sm:$0xff] %v171
  %482 = vst [vmem:[%s2 + $0x18] sm:$0xff] %v176
  %483 = vst [vmem:[%s2 + $0x20] sm:$0xff] %v181
  %484 = vst [vmem:[%s2 + $0x28] sm:$0xff] %v186
  %485 = vst [vmem:[%s2 + $0x30] sm:$0xff] %v191
  %486 = vst [vmem:[%s2 + $0x38] sm:$0xff] %v196
  %487 = vst [vmem:[%s2 + $0x40] sm:$0xff] %v201
  %488 = vst [vmem:[%s2 + $0x48] sm:$0xff] %v206
  %489 = vst [vmem:[%s2 + $0x50] sm:$0xff] %v211
  %490 = vst [vmem:[%s2 + $0x58] sm:$0xff] %v216
  %491 = vst [vmem:[%s2 + $0x60] sm:$0xff] %v221
  %492 = vst [vmem:[%s2 + $0x68] sm:$0xff] %v226
  %493 = vst [vmem:[%s2 + $0x70] sm:$0xff] %v231
  %494 = vst [vmem:[%s2 + $0x78] sm:$0xff] %v236
  %495 = vst [vmem:[%s2 + $0x80] sm:$0xff] %v241
  %496 = vst [vmem:[%s2 + $0x88] sm:$0xff] %v246
  %497 = vst [vmem:[%s2 + $0x90] sm:$0xff] %v251
  %498 = vst [vmem:[%s2 + $0x98] sm:$0xff] %v256
  %499 = vst [vmem:[%s2 + $0xa0] sm:$0xff] %v261
  %500 = vst [vmem:[%s2 + $0xa8] sm:$0xff] %v266
  %501 = vst [vmem:[%s2 + $0xb0] sm:$0xff] %v271
  %502 = vst [vmem:[%s2 + $0xb8] sm:$0xff] %v276
  %503 = vst [vmem:[%s2 + $0xc0] sm:$0xff] %v281
  %504 = vst [vmem:[%s2 + $0xc8] sm:$0xff] %v286
  %505 = vst [vmem:[%s2 + $0xd0] sm:$0xff] %v291
  %506 = vst [vmem:[%s2 + $0xd8] sm:$0xff] %v296
  %507 = vst [vmem:[%s2 + $0xe0] sm:$0xff] %v301
  %508 = vst [vmem:[%s2 + $0xe8] sm:$0xff] %v306
  %509 = vst [vmem:[%s2 + $0xf0] sm:$0xff] %v311
  %510 = vst [vmem:[%s2 + $0xf8] sm:$0xff] %v316
  %511 = vst [vmem:[%s2 + $0x100] sm:$0xff] %v321
  %512 = vst [vmem:[%s2 + $0x108] sm:$0xff] %v326
  %513 = vst [vmem:[%s2 + $0x110] sm:$0xff] %v331
  %514 = vst [vmem:[%s2 + $0x118] sm:$0xff] %v336
  %515 = vst [vmem:[%s2 + $0x120] sm:$0xff] %v341
  %516 = vst [vmem:[%s2 + $0x128] sm:$0xff] %v346
  %517 = vst [vmem:[%s2 + $0x130] sm:$0xff] %v351
  %518 = vst [vmem:[%s2 + $0x138] sm:$0xff] %v356
  %519 = vst [vmem:[%s2 + $0x140] sm:$0xff] %v361
  %520 = vst [vmem:[%s2 + $0x148] sm:$0xff] %v366
  %521 = vst [vmem:[%s2 + $0x150] sm:$0xff] %v371
  %522 = vst [vmem:[%s2 + $0x158] sm:$0xff] %v376
  %523 = vst [vmem:[%s2 + $0x160] sm:$0xff] %v381
  %524 = vst [vmem:[%s2 + $0x168] sm:$0xff] %v386
  %525 = vst [vmem:[%s2 + $0x170] sm:$0xff] %v391
  %526 = vst [vmem:[%s2 + $0x178] sm:$0xff] %v396
  %527 = vst [vmem:[%s2 + $0x180] sm:$0xff] %v401
  %528 = vst [vmem:[%s2 + $0x188] sm:$0xff] %v406
  %529 = vst [vmem:[%s2 + $0x190] sm:$0xff] %v411
  %530 = vst [vmem:[%s2 + $0x198] sm:$0xff] %v416
  %531 = vst [vmem:[%s2 + $0x1a0] sm:$0xff] %v421
  %532 = vst [vmem:[%s2 + $0x1a8] sm:$0xff] %v426
  %533 = vst [vmem:[%s2 + $0x1b0] sm:$0xff] %v431
  %534 = vst [vmem:[%s2 + $0x1b8] sm:$0xff] %v436
  %535 = vst [vmem:[%s2 + $0x1c0] sm:$0xff] %v441
  %536 = vst [vmem:[%s2 + $0x1c8] sm:$0xff] %v446
  %537 = vst [vmem:[%s2 + $0x1d0] sm:$0xff] %v451
  %538 = vst [vmem:[%s2 + $0x1d8] sm:$0xff] %v456
  %539 = vst [vmem:[%s2 + $0x1e0] sm:$0xff] %v461
  %540 = vst [vmem:[%s2 + $0x1e8] sm:$0xff] %v466
  %541 = vst [vmem:[%s2 + $0x1f0] sm:$0xff] %v471
  %542 = vst [vmem:[%s2 + $0x1f8] sm:$0xff] %v476
  %v543 = vadd.f32 %v161, %v166
  %v544 = vadd.f32 %v543, %v171
  %v545 = vadd.f32 %v544, %v176
  %v546 = vadd.f32 %v545, %v181
  %v547 = vadd.f32 %v546, %v186
  %v548 = vadd.f32 %v547, %v191
  %v549 = vadd.f32 %v548, %v196
  %v550 = vadd.f32 %v549, %v201
  %v551 = vadd.f32 %v550, %v206
  %v552 = vadd.f32 %v551, %v211
  %v553 = vadd.f32 %v552, %v216
  %v554 = vadd.f32 %v553, %v221
  %v555 = vadd.f32 %v554, %v226
  %v556 = vadd.f32 %v555, %v231
  %v557 = vadd.f32 %v556, %v236
  %v558 = vadd.f32 %v557, %v241
  %v559 = vadd.f32 %v558, %v246
  %v560 = vadd.f32 %v559, %v251
  %v561 = vadd.f32 %v560, %v256
  %v562 = vadd.f32 %v561, %v261
  %v563 = vadd.f32 %v562, %v266
  %v564 = vadd.f32 %v563, %v271
  %v565 = vadd.f32 %v564, %v276
  %v566 = vadd.f32 %v565, %v281
  %v567 = vadd.f32 %v566, %v286
  %v568 = vadd.f32 %v567, %v291
  %v569 = vadd.f32 %v568, %v296
  %v570 = vadd.f32 %v569, %v301
  %v571 = vadd.f32 %v570, %v306
  %v572 = vadd.f32 %v571, %v311
  %v573 = vadd.f32 %v572, %v316
  %v574 = vadd.f32 %v573, %v321
  %v575 = vadd.f32 %v574, %v326
  %v576 = vadd.f32 %v575, %v331
  %v577 = vadd.f32 %v576, %v336
  %v578 = vadd.f32 %v577, %v341
  %v579 = vadd.f32 %v578, %v346
  %v580 = vadd.f32 %v579, %v351
  %v581 = vadd.f32 %v580, %v356
  %v582 = vadd.f32 %v581, %v361
  %v583 = vadd.f32 %v582, %v366
  %v584 = vadd.f32 %v583, %v371
  %v585 = vadd.f32 %v584, %v376
  %v586 = vadd.f32 %v585, %v381
  %v587 = vadd.f32 %v586, %v386
  %v588 = vadd.f32 %v587, %v391
  %v589 = vadd.f32 %v588, %v396
  %v590 = vadd.f32 %v589, %v401
  %v591 = vadd.f32 %v590, %v406
  %v592 = vadd.f32 %v591, %v411
  %v593 = vadd.f32 %v592, %v416
  %v594 = vadd.f32 %v593, %v421
  %v595 = vadd.f32 %v594, %v426
  %v596 = vadd.f32 %v595, %v431
  %v597 = vadd.f32 %v596, %v436
  %v598 = vadd.f32 %v597, %v441
  %v599 = vadd.f32 %v598, %v446
  %v600 = vadd.f32 %v599, %v451
  %v601 = vadd.f32 %v600, %v456
  %v602 = vadd.f32 %v601, %v461
  %v603 = vadd.f32 %v602, %v466
  %v604 = vadd.f32 %v603, %v471
  %v605 = vadd.f32 %v604, %v476
  %606 = vst [vmem:[%s3] sm:$0xff] %v605
  %v607 = vmul.f32 %v161, %v161
  %v608 = vmul.f32 %v166, %v166
  %v609 = vmul.f32 %v171, %v171
  %v610 = vmul.f32 %v176, %v176
  %v611 = vmul.f32 %v181, %v181
  %v612 = vmul.f32 %v186, %v186
  %v613 = vmul.f32 %v191, %v191
  %v614 = vmul.f32 %v196, %v196
  %v615 = vmul.f32 %v201, %v201
  %v616 = vmul.f32 %v206, %v206
  %v617 = vmul.f32 %v211, %v211
  %v618 = vmul.f32 %v216, %v216
  %v619 = vmul.f32 %v221, %v221
  %v620 = vmul.f32 %v226, %v226
  %v621 = vmul.f32 %v231, %v231
  %v622 = vmul.f32 %v236, %v236
  %v623 = vmul.f32 %v241, %v241
  %v624 = vmul.f32 %v246, %v246
  %v625 = vmul.f32 %v251, %v251
  %v626 = vmul.f32 %v256, %v256
  %v627 = vmul.f32 %v261, %v261
  %v628 = vmul.f32 %v266, %v266
  %v629 = vmul.f32 %v271, %v271
  %v630 = vmul.f32 %v276, %v276
  %v631 = vmul.f32 %v281, %v281
  %v632 = vmul.f32 %v286, %v286
  %v633 = vmul.f32 %v291, %v291
  %v634 = vmul.f32 %v296, %v296
  %v635 = vmul.f32 %v301, %v301
  %v636 = vmul.f32 %v306, %v306
  %v637 = vmul.f32 %v311, %v311
  %v638 = vmul.f32 %v316, %v316
  %v639 = vmul.f32 %v321, %v321
  %v640 = vmul.f32 %v326, %v326
  %v641 = vmul.f32 %v331, %v331
  %v642 = vmul.f32 %v336, %v336
  %v643 = vmul.f32 %v341, %v341
  %v644 = vmul.f32 %v346, %v346
  %v645 = vmul.f32 %v351, %v351
  %v646 = vmul.f32 %v356, %v356
  %v647 = vmul.f32 %v361, %v361
  %v648 = vmul.f32 %v366, %v366
  %v649 = vmul.f32 %v371, %v371
  %v650 = vmul.f32 %v376, %v376
  %v651 = vmul.f32 %v381, %v381
  %v652 = vmul.f32 %v386, %v386
  %v653 = vmul.f32 %v391, %v391
  %v654 = vmul.f32 %v396, %v396
  %v655 = vmul.f32 %v401, %v401
  %v656 = vmul.f32 %v406, %v406
  %v657 = vmul.f32 %v411, %v411
  %v658 = vmul.f32 %v416, %v416
  %v659 = vmul.f32 %v421, %v421
  %v660 = vmul.f32 %v426, %v426
  %v661 = vmul.f32 %v431, %v431
  %v662 = vmul.f32 %v436, %v436
  %v663 = vmul.f32 %v441, %v441
  %v664 = vmul.f32 %v446, %v446
  %v665 = vmul.f32 %v451, %v451
  %v666 = vmul.f32 %v456, %v456
  %v667 = vmul.f32 %v461, %v461
  %v668 = vmul.f32 %v466, %v466
  %v669 = vmul.f32 %v471, %v471
  %v670 = vmul.f32 %v476, %v476
  %v671 = vadd.f32 %v607, %v608
  %v672 = vadd.f32 %v671, %v609
  %v673 = vadd.f32 %v672, %v610
  %v674 = vadd.f32 %v673, %v611
  %v675 = vadd.f32 %v674, %v612
  %v676 = vadd.f32 %v675, %v613
  %v677 = vadd.f32 %v676, %v614
  %v678 = vadd.f32 %v677, %v615
  %v679 = vadd.f32 %v678, %v616
  %v680 = vadd.f32 %v679, %v617
  %v681 = vadd.f32 %v680, %v618
  %v682 = vadd.f32 %v681, %v619
  %v683 = vadd.f32 %v682, %v620
  %v684 = vadd.f32 %v683, %v621
  %v685 = vadd.f32 %v684, %v622
  %v686 = vadd.f32 %v685, %v623
  %v687 = vadd.f32 %v686, %v624
  %v688 = vadd.f32 %v687, %v625
  %v689 = vadd.f32 %v688, %v626
  %v690 = vadd.f32 %v689, %v627
  %v691 = vadd.f32 %v690, %v628
  %v692 = vadd.f32 %v691, %v629
  %v693 = vadd.f32 %v692, %v630
  %v694 = vadd.f32 %v693, %v631
  %v695 = vadd.f32 %v694, %v632
  %v696 = vadd.f32 %v695, %v633
  %v697 = vadd.f32 %v696, %v634
  %v698 = vadd.f32 %v697, %v635
  %v699 = vadd.f32 %v698, %v636
  %v700 = vadd.f32 %v699, %v637
  %v701 = vadd.f32 %v700, %v638
  %v702 = vadd.f32 %v701, %v639
  %v703 = vadd.f32 %v702, %v640
  %v704 = vadd.f32 %v703, %v641
  %v705 = vadd.f32 %v704, %v642
  %v706 = vadd.f32 %v705, %v643
  %v707 = vadd.f32 %v706, %v644
  %v708 = vadd.f32 %v707, %v645
  %v709 = vadd.f32 %v708, %v646
  %v710 = vadd.f32 %v709, %v647
  %v711 = vadd.f32 %v710, %v648
  %v712 = vadd.f32 %v711, %v649
  %v713 = vadd.f32 %v712, %v650
  %v714 = vadd.f32 %v713, %v651
  %v715 = vadd.f32 %v714, %v652
  %v716 = vadd.f32 %v715, %v653
  %v717 = vadd.f32 %v716, %v654
  %v718 = vadd.f32 %v717, %v655
  %v719 = vadd.f32 %v718, %v656
  %v720 = vadd.f32 %v719, %v657
  %v721 = vadd.f32 %v720, %v658
  %v722 = vadd.f32 %v721, %v659
  %v723 = vadd.f32 %v722, %v660
  %v724 = vadd.f32 %v723, %v661
  %v725 = vadd.f32 %v724, %v662
  %v726 = vadd.f32 %v725, %v663
  %v727 = vadd.f32 %v726, %v664
  %v728 = vadd.f32 %v727, %v665
  %v729 = vadd.f32 %v728, %v666
  %v730 = vadd.f32 %v729, %v667
  %v731 = vadd.f32 %v730, %v668
  %v732 = vadd.f32 %v731, %v669
  %v733 = vadd.f32 %v732, %v670
  %734 = vst [vmem:[%s4] sm:$0xff] %v733
  // Predicated region
  $region10: #{conv_bn_leakyrelu.2} parent=0 // pred_check
    _
  $region11: #{conv_bn_leakyrelu.2} parent=0 // pred_check_branch
    %736 = sbr.rel (0) target = $region13
  $region12: #{conv_bn_leakyrelu.2} parent=0 // pred_region
    _
  $region13: #{conv_bn_leakyrelu.2} parent=0 // pred_fallthru
    _
  // Predicated region
  $region14: #{conv_bn_leakyrelu.2} parent=0 // pred_check
    _
  $region15: #{conv_bn_leakyrelu.2} parent=0 // pred_check_branch
    %738 = sbr.rel (0) target = $region17
  $region16: #{conv_bn_leakyrelu.2} parent=0 // pred_region
    _
  $region17: #{conv_bn_leakyrelu.2} parent=0 // pred_fallthru
    _
  // Predicated region
  $region18: #{conv_bn_leakyrelu.2} parent=0 // pred_check
    _
  $region19: #{conv_bn_leakyrelu.2} parent=0 // pred_check_branch
    %740 = sbr.rel (0) target = $region21
  $region20: #{conv_bn_leakyrelu.2} parent=0 // pred_region
    _
  $region21: #{conv_bn_leakyrelu.2} parent=0 // pred_fallthru
    _
  // Predicated region
  $region22: #{conv_bn_leakyrelu.2} parent=0 // pred_check
    _
  $region23: #{conv_bn_leakyrelu.2} parent=0 // pred_check_branch
    %742 = sbr.rel (0) target = $region25
  $region24: #{conv_bn_leakyrelu.2} parent=0 // pred_region
    _
  $region25: #{conv_bn_leakyrelu.2} parent=0 // pred_fallthru
    _
  // Predicated region
  $region26: #{conv_bn_leakyrelu.2} parent=0 // pred_check
    _
  $region27: #{conv_bn_leakyrelu.2} parent=0 // pred_check_branch
    %744 = sbr.rel (0) target = $region29
  $region28: #{conv_bn_leakyrelu.2} parent=0 // pred_region
    _
  $region29: #{conv_bn_leakyrelu.2} parent=0 // pred_fallthru
    _
  // Predicated region
  $region30: #{conv_bn_leakyrelu.2} parent=0 // pred_check
    _
  $region31: #{conv_bn_leakyrelu.2} parent=0 // pred_check_branch
    %746 = sbr.rel (0) target = $region33
  $region32: #{conv_bn_leakyrelu.2} parent=0 // pred_region
    _
  $region33: #{conv_bn_leakyrelu.2} parent=0 // pred_fallthru
    _

// kernel: conv_bn_leakyrelu.3
$region0: #{conv_bn_leakyrelu.3}
  #allocation0 [shape = 'u32[]', space=smem, size = 0x4, offset = 0x4, fixed_abs, tag = 'smem constant byte address 0x4 - core index']
  #allocation1 [shape = 'u32[144,128]{1,0:T(1,128)}', space=vmem, size = 0x12000, scoped, tag = 'internal scratch']
  %s0 = inlined_call_operand.vmem [shape: f32[512,128], index: 0, kind: input, shape index: {}, may-alias: {0,3}]
  %s1 = inlined_call_operand.vmem [shape: f32[1,128], index: 1, kind: input, shape index: {}]
  %s2 = inlined_call_operand.vmem [shape: f32[1,128], index: 2, kind: input, shape index: {}]
  %s3 = inlined_call_operand.vmem [shape: f32[512,128], index: 3, kind: output, shape index: {}, may-alias: {0,3}]
  %s4 = sld [smem:[#allocation0]]
  $region22: #{conv_bn_leakyrelu.3} parent=0
    _
  %s6 = ssub.s32 1, %s4
  %s7 = scalar_select 0, %s6, %s4
  // Predicated region
  $region2: #{conv_bn_leakyrelu.3} parent=0 // pred_check
    _
  $region3: #{conv_bn_leakyrelu.3} parent=0 // pred_check_branch
    %9 = sbr.rel (0) target = $region5
  $region4: #{conv_bn_leakyrelu.3} parent=0 // pred_region
    _
  $region5: #{conv_bn_leakyrelu.3} parent=0 // pred_fallthru
    _
  // Predicated region
  $region6: #{conv_bn_leakyrelu.3} parent=0 // pred_check
    _
  $region7: #{conv_bn_leakyrelu.3} parent=0 // pred_check_branch
    %11 = sbr.rel (0) target = $region9
  $region8: #{conv_bn_leakyrelu.3} parent=0 // pred_region
    _
  $region9: #{conv_bn_leakyrelu.3} parent=0 // pred_fallthru
    _
  // Predicated region
  $region10: #{conv_bn_leakyrelu.3} parent=0 // pred_check
    _
  $region11: #{conv_bn_leakyrelu.3} parent=0 // pred_check_branch
    %13 = sbr.rel (0) target = $region13
  $region12: #{conv_bn_leakyrelu.3} parent=0 // pred_region
    _
  $region13: #{conv_bn_leakyrelu.3} parent=0 // pred_fallthru
    _
  %v14 = vld [vmem:[%s0] sm:$0xff]
  %v15 = vld [vmem:[%s0 + $0x8] sm:$0xff]
  %v16 = vld [vmem:[%s0 + $0x10] sm:$0xff]
  %v17 = vld [vmem:[%s0 + $0x18] sm:$0xff]
  %v18 = vld [vmem:[%s0 + $0x20] sm:$0xff]
  %v19 = vld [vmem:[%s0 + $0x28] sm:$0xff]
  %v20 = vld [vmem:[%s0 + $0x30] sm:$0xff]
  %v21 = vld [vmem:[%s0 + $0x38] sm:$0xff]
  %v22 = vld [vmem:[%s0 + $0x40] sm:$0xff]
  %v23 = vld [vmem:[%s0 + $0x48] sm:$0xff]
  %v24 = vld [vmem:[%s0 + $0x50] sm:$0xff]
  %v25 = vld [vmem:[%s0 + $0x58] sm:$0xff]
  %v26 = vld [vmem:[%s0 + $0x60] sm:$0xff]
  %v27 = vld [vmem:[%s0 + $0x68] sm:$0xff]
  %v28 = vld [vmem:[%s0 + $0x70] sm:$0xff]
  %v29 = vld [vmem:[%s0 + $0x78] sm:$0xff]
  %v30 = vld [vmem:[%s0 + $0x80] sm:$0xff]
  %v31 = vld [vmem:[%s0 + $0x88] sm:$0xff]
  %v32 = vld [vmem:[%s0 + $0x90] sm:$0xff]
  %v33 = vld [vmem:[%s0 + $0x98] sm:$0xff]
  %v34 = vld [vmem:[%s0 + $0xa0] sm:$0xff]
  %v35 = vld [vmem:[%s0 + $0xa8] sm:$0xff]
  %v36 = vld [vmem:[%s0 + $0xb0] sm:$0xff]
  %v37 = vld [vmem:[%s0 + $0xb8] sm:$0xff]
  %v38 = vld [vmem:[%s0 + $0xc0] sm:$0xff]
  %v39 = vld [vmem:[%s0 + $0xc8] sm:$0xff]
  %v40 = vld [vmem:[%s0 + $0xd0] sm:$0xff]
  %v41 = vld [vmem:[%s0 + $0xd8] sm:$0xff]
  %v42 = vld [vmem:[%s0 + $0xe0] sm:$0xff]
  %v43 = vld [vmem:[%s0 + $0xe8] sm:$0xff]
  %v44 = vld [vmem:[%s0 + $0xf0] sm:$0xff]
  %v45 = vld [vmem:[%s0 + $0xf8] sm:$0xff]
  %v46 = vld [vmem:[%s0 + $0x100] sm:$0xff]
  %v47 = vld [vmem:[%s0 + $0x108] sm:$0xff]
  %v48 = vld [vmem:[%s0 + $0x110] sm:$0xff]
  %v49 = vld [vmem:[%s0 + $0x118] sm:$0xff]
  %v50 = vld [vmem:[%s0 + $0x120] sm:$0xff]
  %v51 = vld [vmem:[%s0 + $0x128] sm:$0xff]
  %v52 = vld [vmem:[%s0 + $0x130] sm:$0xff]
  %v53 = vld [vmem:[%s0 + $0x138] sm:$0xff]
  %v54 = vld [vmem:[%s0 + $0x140] sm:$0xff]
  %v55 = vld [vmem:[%s0 + $0x148] sm:$0xff]
  %v56 = vld [vmem:[%s0 + $0x150] sm:$0xff]
  %v57 = vld [vmem:[%s0 + $0x158] sm:$0xff]
  %v58 = vld [vmem:[%s0 + $0x160] sm:$0xff]
  %v59 = vld [vmem:[%s0 + $0x168] sm:$0xff]
  %v60 = vld [vmem:[%s0 + $0x170] sm:$0xff]
  %v61 = vld [vmem:[%s0 + $0x178] sm:$0xff]
  %v62 = vld [vmem:[%s0 + $0x180] sm:$0xff]
  %v63 = vld [vmem:[%s0 + $0x188] sm:$0xff]
  %v64 = vld [vmem:[%s0 + $0x190] sm:$0xff]
  %v65 = vld [vmem:[%s0 + $0x198] sm:$0xff]
  %v66 = vld [vmem:[%s0 + $0x1a0] sm:$0xff]
  %v67 = vld [vmem:[%s0 + $0x1a8] sm:$0xff]
  %v68 = vld [vmem:[%s0 + $0x1b0] sm:$0xff]
  %v69 = vld [vmem:[%s0 + $0x1b8] sm:$0xff]
  %v70 = vld [vmem:[%s0 + $0x1c0] sm:$0xff]
  %v71 = vld [vmem:[%s0 + $0x1c8] sm:$0xff]
  %v72 = vld [vmem:[%s0 + $0x1d0] sm:$0xff]
  %v73 = vld [vmem:[%s0 + $0x1d8] sm:$0xff]
  %v74 = vld [vmem:[%s0 + $0x1e0] sm:$0xff]
  %v75 = vld [vmem:[%s0 + $0x1e8] sm:$0xff]
  %v76 = vld [vmem:[%s0 + $0x1f0] sm:$0xff]
  %v77 = vld [vmem:[%s0 + $0x1f8] sm:$0xff]
  %v78 = vld [vmem:[%s1] sm:$0x1]
  %v80 = vlaneseq
  %v81 = vshrl.u32 %v80, 7
  %v82 = vsub.s32 0, %v81
  %v83 = vrot.slane %v78, %v82
  %v85 = vmul.f32 %v14, %v83
  %v86 = vmul.f32 %v15, %v83
  %v87 = vmul.f32 %v16, %v83
  %v88 = vmul.f32 %v17, %v83
  %v89 = vmul.f32 %v18, %v83
  %v90 = vmul.f32 %v19, %v83
  %v91 = vmul.f32 %v20, %v83
  %v92 = vmul.f32 %v21, %v83
  %v93 = vmul.f32 %v22, %v83
  %v94 = vmul.f32 %v23, %v83
  %v95 = vmul.f32 %v24, %v83
  %v96 = vmul.f32 %v25, %v83
  %v97 = vmul.f32 %v26, %v83
  %v98 = vmul.f32 %v27, %v83
  %v99 = vmul.f32 %v28, %v83
  %v100 = vmul.f32 %v29, %v83
  %v101 = vmul.f32 %v30, %v83
  %v102 = vmul.f32 %v31, %v83
  %v103 = vmul.f32 %v32, %v83
  %v104 = vmul.f32 %v33, %v83
  %v105 = vmul.f32 %v34, %v83
  %v106 = vmul.f32 %v35, %v83
  %v107 = vmul.f32 %v36, %v83
  %v108 = vmul.f32 %v37, %v83
  %v109 = vmul.f32 %v38, %v83
  %v110 = vmul.f32 %v39, %v83
  %v111 = vmul.f32 %v40, %v83
  %v112 = vmul.f32 %v41, %v83
  %v113 = vmul.f32 %v42, %v83
  %v114 = vmul.f32 %v43, %v83
  %v115 = vmul.f32 %v44, %v83
  %v116 = vmul.f32 %v45, %v83
  %v117 = vmul.f32 %v46, %v83
  %v118 = vmul.f32 %v47, %v83
  %v119 = vmul.f32 %v48, %v83
  %v120 = vmul.f32 %v49, %v83
  %v121 = vmul.f32 %v50, %v83
  %v122 = vmul.f32 %v51, %v83
  %v123 = vmul.f32 %v52, %v83
  %v124 = vmul.f32 %v53, %v83
  %v125 = vmul.f32 %v54, %v83
  %v126 = vmul.f32 %v55, %v83
  %v127 = vmul.f32 %v56, %v83
  %v128 = vmul.f32 %v57, %v83
  %v129 = vmul.f32 %v58, %v83
  %v130 = vmul.f32 %v59, %v83
  %v131 = vmul.f32 %v60, %v83
  %v132 = vmul.f32 %v61, %v83
  %v133 = vmul.f32 %v62, %v83
  %v134 = vmul.f32 %v63, %v83
  %v135 = vmul.f32 %v64, %v83
  %v136 = vmul.f32 %v65, %v83
  %v137 = vmul.f32 %v66, %v83
  %v138 = vmul.f32 %v67, %v83
  %v139 = vmul.f32 %v68, %v83
  %v140 = vmul.f32 %v69, %v83
  %v141 = vmul.f32 %v70, %v83
  %v142 = vmul.f32 %v71, %v83
  %v143 = vmul.f32 %v72, %v83
  %v144 = vmul.f32 %v73, %v83
  %v145 = vmul.f32 %v74, %v83
  %v146 = vmul.f32 %v75, %v83
  %v147 = vmul.f32 %v76, %v83
  %v148 = vmul.f32 %v77, %v83
  %v149 = vld [vmem:[%s2] sm:$0x1]
  %v151 = vlaneseq
  %v152 = vshrl.u32 %v151, 7
  %v153 = vsub.s32 0, %v152
  %v154 = vrot.slane %v149, %v153
  %v156 = vadd.f32 %v85, %v154
  %v157 = vadd.f32 %v86, %v154
  %v158 = vadd.f32 %v87, %v154
  %v159 = vadd.f32 %v88, %v154
  %v160 = vadd.f32 %v89, %v154
  %v161 = vadd.f32 %v90, %v154
  %v162 = vadd.f32 %v91, %v154
  %v163 = vadd.f32 %v92, %v154
  %v164 = vadd.f32 %v93, %v154
  %v165 = vadd.f32 %v94, %v154
  %v166 = vadd.f32 %v95, %v154
  %v167 = vadd.f32 %v96, %v154
  %v168 = vadd.f32 %v97, %v154
  %v169 = vadd.f32 %v98, %v154
  %v170 = vadd.f32 %v99, %v154
  %v171 = vadd.f32 %v100, %v154
  %v172 = vadd.f32 %v101, %v154
  %v173 = vadd.f32 %v102, %v154
  %v174 = vadd.f32 %v103, %v154
  %v175 = vadd.f32 %v104, %v154
  %v176 = vadd.f32 %v105, %v154
  %v177 = vadd.f32 %v106, %v154
  %v178 = vadd.f32 %v107, %v154
  %v179 = vadd.f32 %v108, %v154
  %v180 = vadd.f32 %v109, %v154
  %v181 = vadd.f32 %v110, %v154
  %v182 = vadd.f32 %v111, %v154
  %v183 = vadd.f32 %v112, %v154
  %v184 = vadd.f32 %v113, %v154
  %v185 = vadd.f32 %v114, %v154
  %v186 = vadd.f32 %v115, %v154
  %v187 = vadd.f32 %v116, %v154
  %v188 = vadd.f32 %v117, %v154
  %v189 = vadd.f32 %v118, %v154
  %v190 = vadd.f32 %v119, %v154
  %v191 = vadd.f32 %v120, %v154
  %v192 = vadd.f32 %v121, %v154
  %v193 = vadd.f32 %v122, %v154
  %v194 = vadd.f32 %v123, %v154
  %v195 = vadd.f32 %v124, %v154
  %v196 = vadd.f32 %v125, %v154
  %v197 = vadd.f32 %v126, %v154
  %v198 = vadd.f32 %v127, %v154
  %v199 = vadd.f32 %v128, %v154
  %v200 = vadd.f32 %v129, %v154
  %v201 = vadd.f32 %v130, %v154
  %v202 = vadd.f32 %v131, %v154
  %v203 = vadd.f32 %v132, %v154
  %v204 = vadd.f32 %v133, %v154
  %v205 = vadd.f32 %v134, %v154
  %v206 = vadd.f32 %v135, %v154
  %v207 = vadd.f32 %v136, %v154
  %v208 = vadd.f32 %v137, %v154
  %v209 = vadd.f32 %v138, %v154
  %v210 = vadd.f32 %v139, %v154
  %v211 = vadd.f32 %v140, %v154
  %v212 = vadd.f32 %v141, %v154
  %v213 = vadd.f32 %v142, %v154
  %v214 = vadd.f32 %v143, %v154
  %v215 = vadd.f32 %v144, %v154
  %v216 = vadd.f32 %v145, %v154
  %v217 = vadd.f32 %v146, %v154
  %v218 = vadd.f32 %v147, %v154
  %v219 = vadd.f32 %v148, %v154
  %vm220 = vcmp.gt.f32.partialorder %v156, 0.0
  %vm221 = vcmp.gt.f32.partialorder %v157, 0.0
  %vm222 = vcmp.gt.f32.partialorder %v158, 0.0
  %vm223 = vcmp.gt.f32.partialorder %v159, 0.0
  %vm224 = vcmp.gt.f32.partialorder %v160, 0.0
  %vm225 = vcmp.gt.f32.partialorder %v161, 0.0
  %vm226 = vcmp.gt.f32.partialorder %v162, 0.0
  %vm227 = vcmp.gt.f32.partialorder %v163, 0.0
  %vm228 = vcmp.gt.f32.partialorder %v164, 0.0
  %vm229 = vcmp.gt.f32.partialorder %v165, 0.0
  %vm230 = vcmp.gt.f32.partialorder %v166, 0.0
  %vm231 = vcmp.gt.f32.partialorder %v167, 0.0
  %vm232 = vcmp.gt.f32.partialorder %v168, 0.0
  %vm233 = vcmp.gt.f32.partialorder %v169, 0.0
  %vm234 = vcmp.gt.f32.partialorder %v170, 0.0
  %vm235 = vcmp.gt.f32.partialorder %v171, 0.0
  %vm236 = vcmp.gt.f32.partialorder %v172, 0.0
  %vm237 = vcmp.gt.f32.partialorder %v173, 0.0
  %vm238 = vcmp.gt.f32.partialorder %v174, 0.0
  %vm239 = vcmp.gt.f32.partialorder %v175, 0.0
  %vm240 = vcmp.gt.f32.partialorder %v176, 0.0
  %vm241 = vcmp.gt.f32.partialorder %v177, 0.0
  %vm242 = vcmp.gt.f32.partialorder %v178, 0.0
  %vm243 = vcmp.gt.f32.partialorder %v179, 0.0
  %vm244 = vcmp.gt.f32.partialorder %v180, 0.0
  %vm245 = vcmp.gt.f32.partialorder %v181, 0.0
  %vm246 = vcmp.gt.f32.partialorder %v182, 0.0
  %vm247 = vcmp.gt.f32.partialorder %v183, 0.0
  %vm248 = vcmp.gt.f32.partialorder %v184, 0.0
  %vm249 = vcmp.gt.f32.partialorder %v185, 0.0
  %vm250 = vcmp.gt.f32.partialorder %v186, 0.0
  %vm251 = vcmp.gt.f32.partialorder %v187, 0.0
  %vm252 = vcmp.gt.f32.partialorder %v188, 0.0
  %vm253 = vcmp.gt.f32.partialorder %v189, 0.0
  %vm254 = vcmp.gt.f32.partialorder %v190, 0.0
  %vm255 = vcmp.gt.f32.partialorder %v191, 0.0
  %vm256 = vcmp.gt.f32.partialorder %v192, 0.0
  %vm257 = vcmp.gt.f32.partialorder %v193, 0.0
  %vm258 = vcmp.gt.f32.partialorder %v194, 0.0
  %vm259 = vcmp.gt.f32.partialorder %v195, 0.0
  %vm260 = vcmp.gt.f32.partialorder %v196, 0.0
  %vm261 = vcmp.gt.f32.partialorder %v197, 0.0
  %vm262 = vcmp.gt.f32.partialorder %v198, 0.0
  %vm263 = vcmp.gt.f32.partialorder %v199, 0.0
  %vm264 = vcmp.gt.f32.partialorder %v200, 0.0
  %vm265 = vcmp.gt.f32.partialorder %v201, 0.0
  %vm266 = vcmp.gt.f32.partialorder %v202, 0.0
  %vm267 = vcmp.gt.f32.partialorder %v203, 0.0
  %vm268 = vcmp.gt.f32.partialorder %v204, 0.0
  %vm269 = vcmp.gt.f32.partialorder %v205, 0.0
  %vm270 = vcmp.gt.f32.partialorder %v206, 0.0
  %vm271 = vcmp.gt.f32.partialorder %v207, 0.0
  %vm272 = vcmp.gt.f32.partialorder %v208, 0.0
  %vm273 = vcmp.gt.f32.partialorder %v209, 0.0
  %vm274 = vcmp.gt.f32.partialorder %v210, 0.0
  %vm275 = vcmp.gt.f32.partialorder %v211, 0.0
  %vm276 = vcmp.gt.f32.partialorder %v212, 0.0
  %vm277 = vcmp.gt.f32.partialorder %v213, 0.0
  %vm278 = vcmp.gt.f32.partialorder %v214, 0.0
  %vm279 = vcmp.gt.f32.partialorder %v215, 0.0
  %vm280 = vcmp.gt.f32.partialorder %v216, 0.0
  %vm281 = vcmp.gt.f32.partialorder %v217, 0.0
  %vm282 = vcmp.gt.f32.partialorder %v218, 0.0
  %vm283 = vcmp.gt.f32.partialorder %v219, 0.0
  %v284 = vmul.f32 %v156, 0.1
  %v285 = vmul.f32 %v157, 0.1
  %v286 = vmul.f32 %v158, 0.1
  %v287 = vmul.f32 %v159, 0.1
  %v288 = vmul.f32 %v160, 0.1
  %v289 = vmul.f32 %v161, 0.1
  %v290 = vmul.f32 %v162, 0.1
  %v291 = vmul.f32 %v163, 0.1
  %v292 = vmul.f32 %v164, 0.1
  %v293 = vmul.f32 %v165, 0.1
  %v294 = vmul.f32 %v166, 0.1
  %v295 = vmul.f32 %v167, 0.1
  %v296 = vmul.f32 %v168, 0.1
  %v297 = vmul.f32 %v169, 0.1
  %v298 = vmul.f32 %v170, 0.1
  %v299 = vmul.f32 %v171, 0.1
  %v300 = vmul.f32 %v172, 0.1
  %v301 = vmul.f32 %v173, 0.1
  %v302 = vmul.f32 %v174, 0.1
  %v303 = vmul.f32 %v175, 0.1
  %v304 = vmul.f32 %v176, 0.1
  %v305 = vmul.f32 %v177, 0.1
  %v306 = vmul.f32 %v178, 0.1
  %v307 = vmul.f32 %v179, 0.1
  %v308 = vmul.f32 %v180, 0.1
  %v309 = vmul.f32 %v181, 0.1
  %v310 = vmul.f32 %v182, 0.1
  %v311 = vmul.f32 %v183, 0.1
  %v312 = vmul.f32 %v184, 0.1
  %v313 = vmul.f32 %v185, 0.1
  %v314 = vmul.f32 %v186, 0.1
  %v315 = vmul.f32 %v187, 0.1
  %v316 = vmul.f32 %v188, 0.1
  %v317 = vmul.f32 %v189, 0.1
  %v318 = vmul.f32 %v190, 0.1
  %v319 = vmul.f32 %v191, 0.1
  %v320 = vmul.f32 %v192, 0.1
  %v321 = vmul.f32 %v193, 0.1
  %v322 = vmul.f32 %v194, 0.1
  %v323 = vmul.f32 %v195, 0.1
  %v324 = vmul.f32 %v196, 0.1
  %v325 = vmul.f32 %v197, 0.1
  %v326 = vmul.f32 %v198, 0.1
  %v327 = vmul.f32 %v199, 0.1
  %v328 = vmul.f32 %v200, 0.1
  %v329 = vmul.f32 %v201, 0.1
  %v330 = vmul.f32 %v202, 0.1
  %v331 = vmul.f32 %v203, 0.1
  %v332 = vmul.f32 %v204, 0.1
  %v333 = vmul.f32 %v205, 0.1
  %v334 = vmul.f32 %v206, 0.1
  %v335 = vmul.f32 %v207, 0.1
  %v336 = vmul.f32 %v208, 0.1
  %v337 = vmul.f32 %v209, 0.1
  %v338 = vmul.f32 %v210, 0.1
  %v339 = vmul.f32 %v211, 0.1
  %v340 = vmul.f32 %v212, 0.1
  %v341 = vmul.f32 %v213, 0.1
  %v342 = vmul.f32 %v214, 0.1
  %v343 = vmul.f32 %v215, 0.1
  %v344 = vmul.f32 %v216, 0.1
  %v345 = vmul.f32 %v217, 0.1
  %v346 = vmul.f32 %v218, 0.1
  %v347 = vmul.f32 %v219, 0.1
  %v348 = vsel %vm220, %v156, %v284
  %v349 = vsel %vm221, %v157, %v285
  %v350 = vsel %vm222, %v158, %v286
  %v351 = vsel %vm223, %v159, %v287
  %v352 = vsel %vm224, %v160, %v288
  %v353 = vsel %vm225, %v161, %v289
  %v354 = vsel %vm226, %v162, %v290
  %v355 = vsel %vm227, %v163, %v291
  %v356 = vsel %vm228, %v164, %v292
  %v357 = vsel %vm229, %v165, %v293
  %v358 = vsel %vm230, %v166, %v294
  %v359 = vsel %vm231, %v167, %v295
  %v360 = vsel %vm232, %v168, %v296
  %v361 = vsel %vm233, %v169, %v297
  %v362 = vsel %vm234, %v170, %v298
  %v363 = vsel %vm235, %v171, %v299
  %v364 = vsel %vm236, %v172, %v300
  %v365 = vsel %vm237, %v173, %v301
  %v366 = vsel %vm238, %v174, %v302
  %v367 = vsel %vm239, %v175, %v303
  %v368 = vsel %vm240, %v176, %v304
  %v369 = vsel %vm241, %v177, %v305
  %v370 = vsel %vm242, %v178, %v306
  %v371 = vsel %vm243, %v179, %v307
  %v372 = vsel %vm244, %v180, %v308
  %v373 = vsel %vm245, %v181, %v309
  %v374 = vsel %vm246, %v182, %v310
  %v375 = vsel %vm247, %v183, %v311
  %v376 = vsel %vm248, %v184, %v312
  %v377 = vsel %vm249, %v185, %v313
  %v378 = vsel %vm250, %v186, %v314
  %v379 = vsel %vm251, %v187, %v315
  %v380 = vsel %vm252, %v188, %v316
  %v381 = vsel %vm253, %v189, %v317
  %v382 = vsel %vm254, %v190, %v318
  %v383 = vsel %vm255, %v191, %v319
  %v384 = vsel %vm256, %v192, %v320
  %v385 = vsel %vm257, %v193, %v321
  %v386 = vsel %vm258, %v194, %v322
  %v387 = vsel %vm259, %v195, %v323
  %v388 = vsel %vm260, %v196, %v324
  %v389 = vsel %vm261, %v197, %v325
  %v390 = vsel %vm262, %v198, %v326
  %v391 = vsel %vm263, %v199, %v327
  %v392 = vsel %vm264, %v200, %v328
  %v393 = vsel %vm265, %v201, %v329
  %v394 = vsel %vm266, %v202, %v330
  %v395 = vsel %vm267, %v203, %v331
  %v396 = vsel %vm268, %v204, %v332
  %v397 = vsel %vm269, %v205, %v333
  %v398 = vsel %vm270, %v206, %v334
  %v399 = vsel %vm271, %v207, %v335
  %v400 = vsel %vm272, %v208, %v336
  %v401 = vsel %vm273, %v209, %v337
  %v402 = vsel %vm274, %v210, %v338
  %v403 = vsel %vm275, %v211, %v339
  %v404 = vsel %vm276, %v212, %v340
  %v405 = vsel %vm277, %v213, %v341
  %v406 = vsel %vm278, %v214, %v342
  %v407 = vsel %vm279, %v215, %v343
  %v408 = vsel %vm280, %v216, %v344
  %v409 = vsel %vm281, %v217, %v345
  %v410 = vsel %vm282, %v218, %v346
  %v411 = vsel %vm283, %v219, %v347
  %412 = vst [vmem:[%s3] sm:$0xff] %v348
  %413 = vst [vmem:[%s3 + $0x8] sm:$0xff] %v349
  %414 = vst [vmem:[%s3 + $0x10] sm:$0xff] %v350
  %415 = vst [vmem:[%s3 + $0x18] sm:$0xff] %v351
  %416 = vst [vmem:[%s3 + $0x20] sm:$0xff] %v352
  %417 = vst [vmem:[%s3 + $0x28] sm:$0xff] %v353
  %418 = vst [vmem:[%s3 + $0x30] sm:$0xff] %v354
  %419 = vst [vmem:[%s3 + $0x38] sm:$0xff] %v355
  %420 = vst [vmem:[%s3 + $0x40] sm:$0xff] %v356
  %421 = vst [vmem:[%s3 + $0x48] sm:$0xff] %v357
  %422 = vst [vmem:[%s3 + $0x50] sm:$0xff] %v358
  %423 = vst [vmem:[%s3 + $0x58] sm:$0xff] %v359
  %424 = vst [vmem:[%s3 + $0x60] sm:$0xff] %v360
  %425 = vst [vmem:[%s3 + $0x68] sm:$0xff] %v361
  %426 = vst [vmem:[%s3 + $0x70] sm:$0xff] %v362
  %427 = vst [vmem:[%s3 + $0x78] sm:$0xff] %v363
  %428 = vst [vmem:[%s3 + $0x80] sm:$0xff] %v364
  %429 = vst [vmem:[%s3 + $0x88] sm:$0xff] %v365
  %430 = vst [vmem:[%s3 + $0x90] sm:$0xff] %v366
  %431 = vst [vmem:[%s3 + $0x98] sm:$0xff] %v367
  %432 = vst [vmem:[%s3 + $0xa0] sm:$0xff] %v368
  %433 = vst [vmem:[%s3 + $0xa8] sm:$0xff] %v369
  %434 = vst [vmem:[%s3 + $0xb0] sm:$0xff] %v370
  %435 = vst [vmem:[%s3 + $0xb8] sm:$0xff] %v371
  %436 = vst [vmem:[%s3 + $0xc0] sm:$0xff] %v372
  %437 = vst [vmem:[%s3 + $0xc8] sm:$0xff] %v373
  %438 = vst [vmem:[%s3 + $0xd0] sm:$0xff] %v374
  %439 = vst [vmem:[%s3 + $0xd8] sm:$0xff] %v375
  %440 = vst [vmem:[%s3 + $0xe0] sm:$0xff] %v376
  %441 = vst [vmem:[%s3 + $0xe8] sm:$0xff] %v377
  %442 = vst [vmem:[%s3 + $0xf0] sm:$0xff] %v378
  %443 = vst [vmem:[%s3 + $0xf8] sm:$0xff] %v379
  %444 = vst [vmem:[%s3 + $0x100] sm:$0xff] %v380
  %445 = vst [vmem:[%s3 + $0x108] sm:$0xff] %v381
  %446 = vst [vmem:[%s3 + $0x110] sm:$0xff] %v382
  %447 = vst [vmem:[%s3 + $0x118] sm:$0xff] %v383
  %448 = vst [vmem:[%s3 + $0x120] sm:$0xff] %v384
  %449 = vst [vmem:[%s3 + $0x128] sm:$0xff] %v385
  %450 = vst [vmem:[%s3 + $0x130] sm:$0xff] %v386
  %451 = vst [vmem:[%s3 + $0x138] sm:$0xff] %v387
  %452 = vst [vmem:[%s3 + $0x140] sm:$0xff] %v388
  %453 = vst [vmem:[%s3 + $0x148] sm:$0xff] %v389
  %454 = vst [vmem:[%s3 + $0x150] sm:$0xff] %v390
  %455 = vst [vmem:[%s3 + $0x158] sm:$0xff] %v391
  %456 = vst [vmem:[%s3 + $0x160] sm:$0xff] %v392
  %457 = vst [vmem:[%s3 + $0x168] sm:$0xff] %v393
  %458 = vst [vmem:[%s3 + $0x170] sm:$0xff] %v394
  %459 = vst [vmem:[%s3 + $0x178] sm:$0xff] %v395
  %460 = vst [vmem:[%s3 + $0x180] sm:$0xff] %v396
  %461 = vst [vmem:[%s3 + $0x188] sm:$0xff] %v397
  %462 = vst [vmem:[%s3 + $0x190] sm:$0xff] %v398
  %463 = vst [vmem:[%s3 + $0x198] sm:$0xff] %v399
  %464 = vst [vmem:[%s3 + $0x1a0] sm:$0xff] %v400
  %465 = vst [vmem:[%s3 + $0x1a8] sm:$0xff] %v401
  %466 = vst [vmem:[%s3 + $0x1b0] sm:$0xff] %v402
  %467 = vst [vmem:[%s3 + $0x1b8] sm:$0xff] %v403
  %468 = vst [vmem:[%s3 + $0x1c0] sm:$0xff] %v404
  %469 = vst [vmem:[%s3 + $0x1c8] sm:$0xff] %v405
  %470 = vst [vmem:[%s3 + $0x1d0] sm:$0xff] %v406
  %471 = vst [vmem:[%s3 + $0x1d8] sm:$0xff] %v407
  %472 = vst [vmem:[%s3 + $0x1e0] sm:$0xff] %v408
  %473 = vst [vmem:[%s3 + $0x1e8] sm:$0xff] %v409
  %474 = vst [vmem:[%s3 + $0x1f0] sm:$0xff] %v410
  %475 = vst [vmem:[%s3 + $0x1f8] sm:$0xff] %v411
  // Predicated region
  $region14: #{conv_bn_leakyrelu.3} parent=0 // pred_check
    _
  $region15: #{conv_bn_leakyrelu.3} parent=0 // pred_check_branch
    %477 = sbr.rel (0) target = $region17
  $region16: #{conv_bn_leakyrelu.3} parent=0 // pred_region
    _
  $region17: #{conv_bn_leakyrelu.3} parent=0 // pred_fallthru
    _
  // Predicated region
  $region18: #{conv_bn_leakyrelu.3} parent=0 // pred_check
    _
  $region19: #{conv_bn_leakyrelu.3} parent=0 // pred_check_branch
    %479 = sbr.rel (0) target = $region21
  $region20: #{conv_bn_leakyrelu.3} parent=0 // pred_region
    _
  $region21: #{conv_bn_leakyrelu.3} parent=0 // pred_fallthru
    _

</llo_original>
